<compile_context>
chip_gen: v7x
topology: tpu7x:2x2x1
jax: 0.10.0
libtpu: 0.0.40
codegen_flags: <defaults>
</compile_context>

<pallas_src>
import jax
import jax.numpy as jnp
from jax.experimental import pallas as pl
from jax.experimental.pallas import tpu as pltpu


# ----------------------------------------------------------------------------- kernels

def _affine_kernel_single_k(x_ref, w_ref, s_ref, b_ref, o_ref):
    # Decode regime (tk == D): one MXU pass, no accumulator state at all.
    # x_ref : (tm, D)  bf16 activations
    # w_ref : (D, tn)  bf16 or int8 weight, (in, out) layout
    # s_ref : (1, tn)  f32 per-output-channel dequant scale (ones for bf16)
    # b_ref : (1, tn)  f32 bias
    # o_ref : (tm, tn) f32 output
    acc = jnp.dot(x_ref[...], w_ref[...].astype(jnp.bfloat16),
                  preferred_element_type=jnp.float32)
    o_ref[...] = acc * s_ref[...] + b_ref[...]


def _affine_kernel_multi_k(x_ref, w_ref, s_ref, b_ref, o_ref):
    # K-split regime: accumulate directly into the resident f32 output block
    # (its (i, j) block index is constant across k) — no VMEM scratch.
    k = pl.program_id(2)

    @pl.when(k == 0)
    def _init():
        o_ref[...] = jnp.zeros_like(o_ref)

    o_ref[...] += jnp.dot(x_ref[...], w_ref[...].astype(jnp.bfloat16),
                          preferred_element_type=jnp.float32)

    @pl.when(k == pl.num_programs(2) - 1)
    def _finalize():
        o_ref[...] = o_ref[...] * s_ref[...] + b_ref[...]


# ----------------------------------------------------------------------------- tiling

_WEIGHT_TILE_BYTES = 8 * 1024 * 1024   # per-buffer weight-tile cap (v7x-safe w/ 2x buffering)
_X_TILE_BYTES = 4 * 1024 * 1024        # per-buffer activation-tile cap


def _pick_tile(dim, target, align):
    """Largest multiple of `align` that divides `dim` and is <= target.

    Falls back to the full extent (always a legal block) only if no aligned
    divisor exists, never to an arbitrary oversized tile.
    """
    if dim <= target:
        return dim
    t = (target // align) * align
    while t >= align:
        if dim % t == 0:
            return t
        t -= align
    return dim


def _select_tiles(B, D, w_isz, x_isz, tm, tn, tk):
    if tm is None:
        # Large-B (prefill) calls get 256-row tiles to fill the 256-deep MXU
        # and cut weight re-streaming; small-B decode just takes the full batch.
        tm = _pick_tile(B, 256, 8)
    if tn is None:
        # Widest lane-aligned tn whose single-K (D x tn) weight tile fits the
        # per-buffer budget, capped at 1024; keep >= 2 output tiles along j so
        # both v7x TensorCores get work when the i axis has only one tile.
        tn_target = max(128, min(1024, (_WEIGHT_TILE_BYTES // max(1, D * w_isz)) // 128 * 128))
        if D >= 2 * 128 and D // tn_target < 2:
            tn_target = max(128, (D // 2) // 128 * 128)
        tn = _pick_tile(D, tn_target, 128)
    if tk is None:
        # Decode regime: collapse the K axis (tk = D) whenever the per-step
        # tiles stay inside the VMEM budget; otherwise fall back to 512-deep K.
        if D * tn * w_isz <= _WEIGHT_TILE_BYTES and tm * D * x_isz <= _X_TILE_BYTES:
            tk = D
        else:
            tk = _pick_tile(D, 512, 128)
    return tm, tn, tk


# ----------------------------------------------------------------------------- params

def prepare_affine_hidden_params(weight, bias, *, weight_dtype=jnp.bfloat16):
    """One-time parameter prep (analogue of checkpoint-load time).

    * Transposes the torch (out, in) weight ONCE to (in, out) so the kernel's
      RHS tile feeds the MXU without per-tile relayout.
    * weight_dtype = jnp.bfloat16 (default) or jnp.int8 (per-output-channel
      symmetric quantization; halves the dominant weight HBM stream — biggest
      payoff on v5e/v6e which have int8 MXUs and lower HBM bandwidth).
      TODO(synk): add an fp8 (e4m3) variant for v7x (no integer MXU mode).

    Returns (w_t, scale, bias): w_t is (in, out); scale is (1, out) f32
    (all-ones for the bf16 path); bias is f32.
    """
    bias = bias.astype(jnp.float32)
    w_t = jnp.transpose(weight.astype(jnp.float32))          # (in, out)
    out_dim = w_t.shape[1]
    if weight_dtype == jnp.int8:
        amax = jnp.max(jnp.abs(w_t), axis=0, keepdims=True)  # per-output-channel
        scale = jnp.where(amax > 0, amax / 127.0, 1.0).astype(jnp.float32)
        w_q = jnp.clip(jnp.round(w_t / scale), -127.0, 127.0).astype(jnp.int8)
        return w_q, scale.reshape(1, out_dim), bias
    scale = jnp.ones((1, out_dim), jnp.float32)
    return w_t.astype(weight_dtype), scale, bias


# ----------------------------------------------------------------------------- wrapper

def affine_hidden(x, w_t, scale, bias, *, tm=None, tn=None, tk=None):
    """y = x @ weight.T + bias (torch.nn.Linear semantics).

    x:     (B, D) activations (any float dtype; cast to bf16 at the boundary)
    w_t:   (D, D) weight already transposed to (in, out) and cast (bf16/int8)
           by prepare_affine_hidden_params
    scale: (1, D) f32 per-output-channel dequant scale (ones for bf16 weights)
    bias:  (D,)   f32
    Output is f32.

    Note: if the resulting grid is (1, 1, 1), a standalone pallas_call is pure
    launch/pipeline overhead — prefer fusing this projection into the
    surrounding decoder kernel or plain jnp.dot at that size.
    """
    B, D = x.shape
    assert w_t.shape == (D, D) and bias.shape == (D,) and scale.shape == (1, D)

    # bf16 activations at the call boundary (halves x HBM bytes, no in-kernel cast).
    x = x.astype(jnp.bfloat16)
    x_isz = jnp.dtype(x.dtype).itemsize
    w_isz = jnp.dtype(w_t.dtype).itemsize

    tm, tn, tk = _select_tiles(B, D, w_isz, x_isz, tm, tn, tk)
    grid = (B // tm, D // tn, D // tk)
    kernel = _affine_kernel_single_k if grid[2] == 1 else _affine_kernel_multi_k

    bias2d = bias.reshape(1, D).astype(jnp.float32)

    # Double-buffered tiles (x, w, scale, bias, out); generous but bounded headroom.
    vmem_need = 2 * (tm * tk * x_isz + tk * tn * w_isz + 2 * tn * 4 + tm * tn * 4)
    vmem_limit = int(min(max(vmem_need + 8 * 1024 * 1024, 16 * 1024 * 1024),
                         48 * 1024 * 1024))

    # Actual HBM traffic including refetch: the weight streams once per i-tile,
    # the activations once per j-tile.
    gi, gj, _ = grid
    cost = pl.CostEstimate(
        flops=2 * B * D * D,
        transcendentals=0,
        bytes_accessed=int(gi * D * D * w_isz     # weight (re)streamed per i
                           + gj * B * D * x_isz   # x (re)streamed per j
                           + gi * 2 * D * 4       # bias + scale per i
                           + B * D * 4),          # output written once
    )

    return pl.pallas_call(
        kernel,
        out_shape=jax.ShapeDtypeStruct((B, D), jnp.float32),
        grid_spec=pltpu.PrefetchScalarGridSpec(
            num_scalar_prefetch=0,
            grid=grid,
            in_specs=[
                pl.BlockSpec((tm, tk), lambda i, j, k: (i, k)),   # activations
                pl.BlockSpec((tk, tn), lambda i, j, k: (k, j)),   # weight (in, out)
                pl.BlockSpec((1, tn), lambda i, j, k: (0, j)),    # dequant scale
                pl.BlockSpec((1, tn), lambda i, j, k: (0, j)),    # bias
            ],
            out_specs=pl.BlockSpec((tm, tn), lambda i, j, k: (i, j)),
        ),
        compiler_params=pltpu.CompilerParams(
            dimension_semantics=("parallel", "parallel", "arbitrary"),
            vmem_limit_bytes=vmem_limit,
        ),
        cost_estimate=cost,
    )(x, w_t, scale, bias2d)


def init_linear_params(key, in_features, out_features):
    """Deterministic init mirroring torch.nn.Linear defaults (uniform ±1/sqrt(fan_in))."""
    kw, kb = jax.random.split(key)
    bound = 1.0 / jnp.sqrt(jnp.float32(in_features))
    weight = jax.random.uniform(
        kw, (out_features, in_features), jnp.float32, minval=-bound, maxval=bound
    )
    bias = jax.random.uniform(
        kb, (out_features,), jnp.float32, minval=-bound, maxval=bound
    )
    return weight, bias


# ----------------------------------------------------------------------------- demo

if __name__ == "__main__":
    # Small, shape-consistent example: a batch of decoder hidden states
    # (batch, decoder_dim) in the AR-decode regime.  D=256 keeps the grid
    # multi-tile (j axis) so the kernel path is actually exercised — at a
    # (1,1,1) grid one would fuse/fall back to jnp.dot instead.
    B = 8      # batch of decoder hidden states
    D = 256    # decoder_dim (vreg/MXU friendly: multiple of (8, 128))

    key = jax.random.PRNGKey(0)
    k_x, k_p = jax.random.split(key)

    x = jax.random.normal(k_x, (B, D), jnp.float32)          # decoder hidden h
    weight_f32, bias_f32 = init_linear_params(k_p, D, D)     # affine_hidden params

    # f32 torch.nn.Linear reference.
    y_ref = x @ weight_f32.T + bias_f32

    # --- default bf16-weight path (decode regime: tk = D, single K step) ------
    w_bf16, s_bf16, b_f32 = prepare_affine_hidden_params(weight_f32, bias_f32)
    y = affine_hidden(x, w_bf16, s_bf16, b_f32)
    y = jax.block_until_ready(y)
    assert y.shape == (B, D)
    assert jnp.allclose(y, y_ref, atol=5e-2, rtol=5e-2), \
        "bf16-weight kernel mismatch vs f32 torch.nn.Linear reference"

    # --- int8-weight path (v5e/v6e weight-bandwidth saver) --------------------
    w_i8, s_i8, _ = prepare_affine_hidden_params(weight_f32, bias_f32,
                                                 weight_dtype=jnp.int8)
    y8 = affine_hidden(x, w_i8, s_i8, b_f32)
    y8 = jax.block_until_ready(y8)
    assert jnp.allclose(y8, y_ref, atol=8e-2, rtol=8e-2), \
        "int8-weight kernel mismatch vs f32 torch.nn.Linear reference"

    # --- forced K-split path (exercises accumulation into the resident o_ref) -
    y_mk = affine_hidden(x, w_bf16, s_bf16, b_f32, tk=128)
    y_mk = jax.block_until_ready(y_mk)
    assert jnp.allclose(y_mk, y_ref, atol=5e-2, rtol=5e-2), \
        "multi-K kernel mismatch vs f32 torch.nn.Linear reference"

    print("KERNEL_OK")
</pallas_src>

<mosaic_0001>
module attributes {stable_mosaic.version = 11 : i64} {
  func.func @_affine_kernel_single_k(%arg0: i32, %arg1: i32, %arg2: i32, %arg3: memref<8x256xbf16, #tpu.memory_space<vmem>>, %arg4: memref<256x128xbf16, #tpu.memory_space<vmem>>, %arg5: memref<1x128xf32, #tpu.memory_space<vmem>>, %arg6: memref<1x128xf32, #tpu.memory_space<vmem>>, %arg7: memref<8x128xf32, #tpu.memory_space<vmem>>) attributes {dimension_semantics = [#tpu.dimension_semantics<parallel>, #tpu.dimension_semantics<parallel>, #tpu.dimension_semantics<arbitrary>], iteration_bounds = array<i64: 1, 2, 1>, scalar_prefetch = 0 : i64, scratch_operands = 0 : i64, tpu.core_type = #tpu.core_type<tc>, window_params = [{transform_indices = @transform_0, window_bounds = array<i64: 8, 256>}, {transform_indices = @transform_1, window_bounds = array<i64: 256, 128>}, {transform_indices = @transform_2, window_bounds = array<i64: 1, 128>}, {transform_indices = @transform_3, window_bounds = array<i64: 1, 128>}, {transform_indices = @transform_4, window_bounds = array<i64: 8, 128>}]} {
    %c0 = arith.constant 0 : index
    %c0_0 = arith.constant 0 : index
    %0 = vector.load %arg3[%c0, %c0_0] : memref<8x256xbf16, #tpu.memory_space<vmem>>, vector<8x256xbf16>
    %c0_1 = arith.constant 0 : index
    %c0_2 = arith.constant 0 : index
    %1 = vector.load %arg4[%c0_1, %c0_2] : memref<256x128xbf16, #tpu.memory_space<vmem>>, vector<256x128xbf16>
    %cst = arith.constant dense<0.000000e+00> : vector<8x128xf32>
    %2 = tpu.matmul %0, %1, %cst {dimension_numbers = #tpu.dot_dimension_numbers<[1], [0], [0], [1], [0, 0, 1, 1], [], []>} : vector<8x256xbf16>, vector<256x128xbf16>, vector<8x128xf32> -> vector<8x128xf32>
    %c0_3 = arith.constant 0 : index
    %c0_4 = arith.constant 0 : index
    %3 = vector.load %arg5[%c0_3, %c0_4] : memref<1x128xf32, #tpu.memory_space<vmem>>, vector<1x128xf32>
    %4 = vector.broadcast %3 : vector<1x128xf32> to vector<8x128xf32>
    %5 = arith.mulf %2, %4 : vector<8x128xf32>
    %c0_5 = arith.constant 0 : index
    %c0_6 = arith.constant 0 : index
    %6 = vector.load %arg6[%c0_5, %c0_6] : memref<1x128xf32, #tpu.memory_space<vmem>>, vector<1x128xf32>
    %7 = vector.broadcast %6 : vector<1x128xf32> to vector<8x128xf32>
    %8 = arith.addf %5, %7 : vector<8x128xf32>
    %c0_7 = arith.constant 0 : index
    %c0_8 = arith.constant 0 : index
    %9 = vector.load %arg7[%c0_7, %c0_8] : memref<8x128xf32, #tpu.memory_space<vmem>>, vector<8x128xf32>
    tpu.vector_store %arg7[%c0_7, %c0_8], %8 {strides = array<i32>} : memref<8x128xf32, #tpu.memory_space<vmem>>, vector<8x128xf32>,
    return
  }
  func.func @transform_0(%arg0: i32, %arg1: i32, %arg2: i32) -> (i32, i32) {
    %c0_i32 = arith.constant 0 : i32
    return %arg0, %arg2 : i32, i32
  }
  func.func @transform_1(%arg0: i32, %arg1: i32, %arg2: i32) -> (i32, i32) {
    %c0_i32 = arith.constant 0 : i32
    return %arg2, %arg1 : i32, i32
  }
  func.func @transform_2(%arg0: i32, %arg1: i32, %arg2: i32) -> (i32, i32) {
    %c0_i32 = arith.constant 0 : i32
    %c0_i32_0 = arith.constant 0 : i32
    return %c0_i32, %arg1 : i32, i32
  }
  func.func @transform_3(%arg0: i32, %arg1: i32, %arg2: i32) -> (i32, i32) {
    %c0_i32 = arith.constant 0 : i32
    %c0_i32_0 = arith.constant 0 : i32
    return %c0_i32, %arg1 : i32, i32
  }
  func.func @transform_4(%arg0: i32, %arg1: i32, %arg2: i32) -> (i32, i32) {
    %c0_i32 = arith.constant 0 : i32
    return %arg0, %arg1 : i32, i32
  }
}

</mosaic_0001>

<llo_original>
// kernel: tpu_custom_call.1
$region0: #{tpu_custom_call.1}
  #allocation0 [shape = 'u32[]', space=smem, size = 0x4, offset = 0x4, fixed_abs, tag = 'smem constant byte address 0x4 - core index']
  #allocation1 [shape = 'u32[144,128]{1,0:T(1,128)}', space=vmem, size = 0x12000, scoped, tag = 'internal scratch']
  %s0 = inlined_call_operand.hbm [shape: bf16[8,256], index: 0, kind: input, shape index: {}]
  %s1 = inlined_call_operand.hbm [shape: bf16[256,256], index: 1, kind: input, shape index: {}]
  %s2 = inlined_call_operand.vmem [shape: f32[1,256], index: 2, kind: input, shape index: {}]
  %s3 = inlined_call_operand.vmem [shape: f32[1,256], index: 3, kind: input, shape index: {}]
  %s4 = inlined_call_operand.hbm [shape: f32[8,256], index: 4, kind: output, shape index: {}]
  %s5 = sld [smem:[#allocation0]]
  $region57: #{tpu_custom_call.1} parent=0
    _
  %s7 = ssub.s32 1, %s5
  %s8 = scalar_select 0, %s7, %s5
  $region1: #{tpu_custom_call.1} parent=0
    #allocation2 [shape = 'u8[4096]{0}', space=vmem, size = 0x1000, scoped, tag = 'input window, operand 0, single buffered']
    #allocation3 [shape = 's32[2]{0}', space=sflag, size = 0x8, scoped, tag = 'scoped memory for tpu_custom_call.1']
    #allocation4 [shape = 's32[2]{0}', space=sflag, size = 0x8, scoped, tag = 'scoped memory for tpu_custom_call.1']
    #allocation5 [shape = 'u8[131072]{0}', space=vmem, size = 0x20000, scoped, tag = 'input window, operand 1']
    #allocation6 [shape = 's32[2]{0}', space=sflag, size = 0x8, scoped, tag = 'scoped memory for tpu_custom_call.1']
    #allocation7 [shape = 'u8[8192]{0}', space=vmem, size = 0x2000, scoped, tag = 'output window, operand 0']
    %9 = vsyncpa [#allocation3], 0
    %10 = vsyncpa [#allocation6], 0
    %s11 = scalar_lea.sflag [#allocation6], 1
    %12 = vsyncpa %s11, 0
    %13 = vsyncpa [#allocation4], 0
    %s14 = scalar_lea.sflag [#allocation4], 1
    %15 = vsyncpa %s14, 0
    loop: start=0, step=1, limit=4
    $region2: #{tpu_custom_call.1} parent=1 // loop_pre_header
      _
    $region3: #{tpu_custom_call.1} parent=1 // loop_header
      %s17 = sphi 0, %s21
      %p18 = scmp.ge.s32.totalorder %s17, 4
      %s24 = sphi 0, %s43
      %s25 = sphi 0, %s39
      %s26 = sphi 0, %s35
      %s27 = sphi 0, %s24
      %s28 = sphi 0, %s25
      %s29 = sphi 0, %s26
      %s30 = sphi 0, %s27
      %s31 = sphi 0, %s28
      %s32 = sphi 0, %s29
      %s48 = sphi 0, %s50
      %s51 = sphi 0, %s48
      %s52 = sphi 0, %s51
      %s68 = sphi 0, %s52
      %s76 = sphi 0, %s78
      %s79 = sphi 0, %s76
      %s80 = sphi 0, %s79
      %s96 = sphi 0, %s80
      %s102 = sphi 0, %s104
      %s105 = sphi 0, %s102
      %s106 = sphi 0, %s105
      %s122 = sphi 0, %s106
      %s128 = sphi 0, %s130
      %s131 = sphi 0, %s128
      %s132 = sphi 0, %s131
      %s148 = sphi 0, %s132
      %s156 = sphi 0, %s158
      %s159 = sphi 0, %s156
      %s160 = sphi 0, %s159
      %s176 = sphi 0, %s160
    $region4: #{tpu_custom_call.1} parent=1 // loop_header_branch
      %20 = sbr.rel (%p18) target = $region8
    $region5: #{tpu_custom_call.1} parent=1 // loop_body
      %s22 = ssub.s32 %s17, 1
      %s23 = ssub.s32 %s17, 2
      %s33 = sadd.s32 1, %s26
      %p34 = scmp.ge.s32.totalorder %s33, 1
      %s35 = scalar_select %p34, 0, %s33
      %s36 = sadd.s32 1, %s25
      %s37 = scalar_select %p34, %s36, %s25
      %p38 = scmp.ge.s32.totalorder %s37, 2
      %s39 = scalar_select %p38, 0, %s37
      %s40 = sadd.s32 1, %s24
      %s41 = scalar_select %p38, %s40, %s24
      %p42 = scmp.ge.s32.totalorder %s41, 1
      %s43 = scalar_select %p42, 0, %s41
      %s44 = ssub.s32 %s24, %s43
      %s45 = ssub.s32 %s26, %s35
      %s46 = sor.u32 %s44, %s45
      %p47 = scmp.eq.s32.totalorder %s46, 0
      %s49 = sadd.s32 %s48, 1
      %s50 = scalar_select %p47, %s48, %s49
      %p53 = pneg %p47
      %p54 = scmp.eq.s32.totalorder %s17, 1
      %p55 = por %p53, %p54
      %p56 = scmp.ne.s32.totalorder %s48, %s51
      %p57 = scmp.eq.s32.totalorder %s17, 0
      %p58 = por %p56, %p57
      %p59 = scmp.ne.s32.totalorder %s48, %s51
      %p60 = scmp.eq.s32.totalorder %s22, 1
      %p61 = por %p59, %p60
      %p62 = scmp.ne.s32.totalorder %s51, %s52
      %p63 = scmp.eq.s32.totalorder %s22, 0
      %p64 = por %p62, %p63
      %p65 = scmp.ne.s32.totalorder %s51, %s52
      %p66 = scmp.eq.s32.totalorder %s23, 1
      %p67 = por %p65, %p66
      %p69 = scmp.ne.s32.totalorder %s52, %s68
      %p70 = scmp.eq.s32.totalorder %s23, 0
      %p71 = por %p69, %p70
      %s72 = ssub.s32 %s26, %s35
      %s73 = ssub.s32 %s25, %s39
      %s74 = sor.u32 %s72, %s73
      %p75 = scmp.eq.s32.totalorder %s74, 0
      %s77 = sadd.s32 %s76, 1
      %s78 = scalar_select %p75, %s76, %s77
      %p81 = pneg %p75
      %p82 = scmp.eq.s32.totalorder %s17, 1
      %p83 = por %p81, %p82
      %p84 = scmp.ne.s32.totalorder %s76, %s79
      %p85 = scmp.eq.s32.totalorder %s17, 0
      %p86 = por %p84, %p85
      %p87 = scmp.ne.s32.totalorder %s76, %s79
      %p88 = scmp.eq.s32.totalorder %s22, 1
      %p89 = por %p87, %p88
      %p90 = scmp.ne.s32.totalorder %s79, %s80
      %p91 = scmp.eq.s32.totalorder %s22, 0
      %p92 = por %p90, %p91
      %p93 = scmp.ne.s32.totalorder %s79, %s80
      %p94 = scmp.eq.s32.totalorder %s23, 1
      %p95 = por %p93, %p94
      %p97 = scmp.ne.s32.totalorder %s80, %s96
      %p98 = scmp.eq.s32.totalorder %s23, 0
      %p99 = por %p97, %p98
      %s100 = ssub.s32 %s25, %s39
      %p101 = scmp.eq.s32.totalorder %s100, 0
      %s103 = sadd.s32 %s102, 1
      %s104 = scalar_select %p101, %s102, %s103
      %p107 = pneg %p101
      %p108 = scmp.eq.s32.totalorder %s17, 1
      %p109 = por %p107, %p108
      %p110 = scmp.ne.s32.totalorder %s102, %s105
      %p111 = scmp.eq.s32.totalorder %s17, 0
      %p112 = por %p110, %p111
      %p113 = scmp.ne.s32.totalorder %s102, %s105
      %p114 = scmp.eq.s32.totalorder %s22, 1
      %p115 = por %p113, %p114
      %p116 = scmp.ne.s32.totalorder %s105, %s106
      %p117 = scmp.eq.s32.totalorder %s22, 0
      %p118 = por %p116, %p117
      %p119 = scmp.ne.s32.totalorder %s105, %s106
      %p120 = scmp.eq.s32.totalorder %s23, 1
      %p121 = por %p119, %p120
      %p123 = scmp.ne.s32.totalorder %s106, %s122
      %p124 = scmp.eq.s32.totalorder %s23, 0
      %p125 = por %p123, %p124
      %s126 = ssub.s32 %s25, %s39
      %p127 = scmp.eq.s32.totalorder %s126, 0
      %s129 = sadd.s32 %s128, 1
      %s130 = scalar_select %p127, %s128, %s129
      %p133 = pneg %p127
      %p134 = scmp.eq.s32.totalorder %s17, 1
      %p135 = por %p133, %p134
      %p136 = scmp.ne.s32.totalorder %s128, %s131
      %p137 = scmp.eq.s32.totalorder %s17, 0
      %p138 = por %p136, %p137
      %p139 = scmp.ne.s32.totalorder %s128, %s131
      %p140 = scmp.eq.s32.totalorder %s22, 1
      %p141 = por %p139, %p140
      %p142 = scmp.ne.s32.totalorder %s131, %s132
      %p143 = scmp.eq.s32.totalorder %s22, 0
      %p144 = por %p142, %p143
      %p145 = scmp.ne.s32.totalorder %s131, %s132
      %p146 = scmp.eq.s32.totalorder %s23, 1
      %p147 = por %p145, %p146
      %p149 = scmp.ne.s32.totalorder %s132, %s148
      %p150 = scmp.eq.s32.totalorder %s23, 0
      %p151 = por %p149, %p150
      %s152 = ssub.s32 %s24, %s43
      %s153 = ssub.s32 %s25, %s39
      %s154 = sor.u32 %s152, %s153
      %p155 = scmp.eq.s32.totalorder %s154, 0
      %s157 = sadd.s32 %s156, 1
      %s158 = scalar_select %p155, %s156, %s157
      %p161 = pneg %p155
      %p162 = scmp.eq.s32.totalorder %s17, 1
      %p163 = por %p161, %p162
      %p164 = scmp.ne.s32.totalorder %s156, %s159
      %p165 = scmp.eq.s32.totalorder %s17, 0
      %p166 = por %p164, %p165
      %p167 = scmp.ne.s32.totalorder %s156, %s159
      %p168 = scmp.eq.s32.totalorder %s22, 1
      %p169 = por %p167, %p168
      %p170 = scmp.ne.s32.totalorder %s159, %s160
      %p171 = scmp.eq.s32.totalorder %s22, 0
      %p172 = por %p170, %p171
      %p173 = scmp.ne.s32.totalorder %s159, %s160
      %p174 = scmp.eq.s32.totalorder %s23, 1
      %p175 = por %p173, %p174
      %p177 = scmp.ne.s32.totalorder %s160, %s176
      %p178 = scmp.eq.s32.totalorder %s23, 0
      %p179 = por %p177, %p178
      %p180 = scmp.le.s32.totalorder 1, %s17
      %p181 = scmp.lt.s32.totalorder %s17, 3
      %p182 = pnand %p180, %p181
      %p183 = pneg %p182
      // Predicated region
      $region9: #{tpu_custom_call.1} parent=5 // pred_check
        _
      $region10: #{tpu_custom_call.1} parent=5 // pred_check_branch
        %185 = sbr.rel (%p182) target = $region12
      $region11: #{tpu_custom_call.1} parent=5 // pred_region
        %s186 = ssub.s32 %s17, 1
        // Predicated region
        $region13: #{tpu_custom_call.1} parent=11 // pred_check
          %p187 = pneg %p64
        $region14: #{tpu_custom_call.1} parent=11 // pred_check_branch
          %189 = sbr.rel (%p187) target = $region16
        $region15: #{tpu_custom_call.1} parent=11 // pred_region
          %s190 = smul.u32 2, %s29
          %s192 = ssub.s32 128, 128
          %193 = vsyncadd [#allocation3], %s192
          %s194 = smul.addr %s27, 2
          %s195 = sadd.s32 %s190, %s194
          %s196 = smul.addr %s195, 64
          %s197 = scalar_lea.hbm %s0, %s196
          %s199 = sshll.u32 [#allocation2], 4
          %s200 = int_to_ptr.vmem [resolvable:$true] %s199
          %202 = dma.hbm_to_vmem [thread:$0]  %s197, 128, %s200, [#allocation3]
        $region16: #{tpu_custom_call.1} parent=11 // pred_fallthru
          _
      $region12: #{tpu_custom_call.1} parent=5 // pred_fallthru
        _
      %p203 = scmp.lt.s32.totalorder %s17, 2
      // Predicated region
      $region17: #{tpu_custom_call.1} parent=5 // pred_check
        %p204 = pneg %p203
      $region18: #{tpu_custom_call.1} parent=5 // pred_check_branch
        %206 = sbr.rel (%p204) target = $region20
      $region19: #{tpu_custom_call.1} parent=5 // pred_region
        // Predicated region
        $region21: #{tpu_custom_call.1} parent=19 // pred_check
          %p207 = pneg %p86
        $region22: #{tpu_custom_call.1} parent=19 // pred_check_branch
          %209 = sbr.rel (%p207) target = $region24
        $region23: #{tpu_custom_call.1} parent=19 // pred_region
          %s210 = sand.u32 %s76, 1
          %s211 = scalar_lea.sflag [#allocation6], %s210
          %s212 = sand.u32 %s76, 1
          %s213 = smul.addr %s212, 128
          %s214 = scalar_lea.vmem [#allocation5], %s213
          %s215 = smul.u32 32, %s26
          %s217 = ssub.s32 2048, 2048
          %218 = vsyncadd %s211, %s217
          %s219 = smul.addr %s215, 2
          %s220 = sadd.s32 %s25, %s219
          %s221 = smul.addr %s220, 64
          %s222 = scalar_lea.hbm %s1, %s221
          %s223 = sshll.u32 %s214, 4
          %s224 = int_to_ptr.vmem [resolvable:$true] %s223
          %229 = dma.hbm_to_vmem [thread:$0]  %s222, 2048, %s224, %s211, 128, 64, 4
        $region24: #{tpu_custom_call.1} parent=19 // pred_fallthru
          _
        // Predicated region
        $region25: #{tpu_custom_call.1} parent=19 // pred_check
          %p230 = pneg %p112
        $region26: #{tpu_custom_call.1} parent=19 // pred_check_branch
          %232 = sbr.rel (%p230) target = $region28
        $region27: #{tpu_custom_call.1} parent=19 // pred_region
          %p233 = scmp.lt.s32.totalorder %s25, 1
          %s234 = scalar_select %p233, %s25, 1
          %s235 = scalar_lea.vmem %s2, %s234
        $region28: #{tpu_custom_call.1} parent=19 // pred_fallthru
          _
        // Predicated region
        $region29: #{tpu_custom_call.1} parent=19 // pred_check
          %p236 = pneg %p138
        $region30: #{tpu_custom_call.1} parent=19 // pred_check_branch
          %238 = sbr.rel (%p236) target = $region32
        $region31: #{tpu_custom_call.1} parent=19 // pred_region
          %p239 = scmp.lt.s32.totalorder %s25, 1
          %s240 = scalar_select %p239, %s25, 1
          %s241 = scalar_lea.vmem %s3, %s240
        $region32: #{tpu_custom_call.1} parent=19 // pred_fallthru
          _
      $region20: #{tpu_custom_call.1} parent=5 // pred_fallthru
        _
      %p242 = scmp.le.s32.totalorder 1, %s17
      %p243 = scmp.lt.s32.totalorder %s17, 3
      %p244 = pnand %p242, %p243
      %p245 = pneg %p244
      // Predicated region
      $region33: #{tpu_custom_call.1} parent=5 // pred_check
        _
      $region34: #{tpu_custom_call.1} parent=5 // pred_check_branch
        %247 = sbr.rel (%p244) target = $region36
      $region35: #{tpu_custom_call.1} parent=5 // pred_region
        %s248 = ssub.s32 %s17, 1
        // Predicated region
        $region37: #{tpu_custom_call.1} parent=35 // pred_check
          %p249 = pneg %p64
        $region38: #{tpu_custom_call.1} parent=35 // pred_check_branch
          %251 = sbr.rel (%p249) target = $region40
        $region39: #{tpu_custom_call.1} parent=35 // pred_region
          %252 = dma.done [#allocation3], 128
        $region40: #{tpu_custom_call.1} parent=35 // pred_fallthru
          _
        %s253 = sand.u32 %s79, 1
        %s254 = scalar_lea.sflag [#allocation6], %s253
        %s255 = sand.u32 %s79, 1
        %s256 = smul.addr %s255, 128
        %s257 = scalar_lea.vmem [#allocation5], %s256
        // Predicated region
        $region41: #{tpu_custom_call.1} parent=35 // pred_check
          %p258 = pneg %p92
        $region42: #{tpu_custom_call.1} parent=35 // pred_check_branch
          %260 = sbr.rel (%p258) target = $region44
        $region43: #{tpu_custom_call.1} parent=35 // pred_region
          %261 = dma.done %s254, 2048
        $region44: #{tpu_custom_call.1} parent=35 // pred_fallthru
          _
        %p262 = pneg %p64
        %p263 = pneg %p61
        %s264 = sand.u32 %s79, 1
        %s265 = scalar_lea.sflag [#allocation6], %s264
        %s266 = sand.u32 %s79, 1
        %s267 = smul.addr %s266, 128
        %s268 = scalar_lea.vmem [#allocation5], %s267
        %p269 = pneg %p92
        %p270 = pneg %p89
        %p271 = scmp.lt.s32.totalorder %s28, 1
        %s272 = scalar_select %p271, %s28, 1
        %s273 = scalar_lea.vmem %s2, %s272
        %p274 = pneg %p118
        %p275 = pneg %p115
        %p276 = scmp.lt.s32.totalorder %s28, 1
        %s277 = scalar_select %p276, %s28, 1
        %s278 = scalar_lea.vmem %s3, %s277
        %p279 = pneg %p144
        %p280 = pneg %p141
        %p281 = pneg %p172
        %p282 = pneg %p169
        %s283 = sand.u32 %s159, 1
        %s284 = scalar_lea.sflag [#allocation4], %s283
        %s285 = sand.u32 %s159, 1
        %s286 = smul.addr %s285, 8
        %s287 = scalar_lea.vmem [#allocation7], %s286
        %s288 = smul.u32 2, %s29
        %s289 = smul.u32 32, %s29
        %p290 = scmp.lt.s32.totalorder %s28, 1
        %s291 = scalar_select %p290, %s28, 1
        %s292 = scalar_lea.vmem %s2, %s291
        %p293 = scmp.lt.s32.totalorder %s28, 1
        %s294 = scalar_select %p293, %s28, 1
        %s295 = scalar_lea.vmem %s3, %s294
        %v297 = vld [vmem:[#allocation2] sm:$0xff]
        %v298 = vld [vmem:[%s257] sm:$0xf]
        %v299 = vld [vmem:[%s257 + $0x4] sm:$0xf]
        %v300 = vld [vmem:[%s257 + $0x8] sm:$0xf]
        %v301 = vld [vmem:[%s257 + $0xc] sm:$0xf]
        %v302 = vld [vmem:[%s257 + $0x10] sm:$0xf]
        %v303 = vld [vmem:[%s257 + $0x14] sm:$0xf]
        %v304 = vld [vmem:[%s257 + $0x18] sm:$0xf]
        %v305 = vld [vmem:[%s257 + $0x1c] sm:$0xf]
        %v306 = vld [vmem:[%s257 + $0x20] sm:$0xf]
        %v307 = vld [vmem:[%s257 + $0x24] sm:$0xf]
        %v308 = vld [vmem:[%s257 + $0x28] sm:$0xf]
        %v309 = vld [vmem:[%s257 + $0x2c] sm:$0xf]
        %v310 = vld [vmem:[%s257 + $0x30] sm:$0xf]
        %v311 = vld [vmem:[%s257 + $0x34] sm:$0xf]
        %v312 = vld [vmem:[%s257 + $0x38] sm:$0xf]
        %v313 = vld [vmem:[%s257 + $0x3c] sm:$0xf]
        %v314 = vld [vmem:[%s257 + $0x40] sm:$0xf]
        %v315 = vld [vmem:[%s257 + $0x44] sm:$0xf]
        %v316 = vld [vmem:[%s257 + $0x48] sm:$0xf]
        %v317 = vld [vmem:[%s257 + $0x4c] sm:$0xf]
        %v318 = vld [vmem:[%s257 + $0x50] sm:$0xf]
        %v319 = vld [vmem:[%s257 + $0x54] sm:$0xf]
        %v320 = vld [vmem:[%s257 + $0x58] sm:$0xf]
        %v321 = vld [vmem:[%s257 + $0x5c] sm:$0xf]
        %v322 = vld [vmem:[%s257 + $0x60] sm:$0xf]
        %v323 = vld [vmem:[%s257 + $0x64] sm:$0xf]
        %v324 = vld [vmem:[%s257 + $0x68] sm:$0xf]
        %v325 = vld [vmem:[%s257 + $0x6c] sm:$0xf]
        %v326 = vld [vmem:[%s257 + $0x70] sm:$0xf]
        %v327 = vld [vmem:[%s257 + $0x74] sm:$0xf]
        %v328 = vld [vmem:[%s257 + $0x78] sm:$0xf]
        %v329 = vld [vmem:[%s257 + $0x7c] sm:$0xf]
        %v331 = vunpack.c.l.b16 %v297
        %v332 = vunpack.c.h.b16 %v297
        %v333 = vpack.c.b16 %v331, %v331
        %v334 = vpack.c.b16 %v332, %v332
        %v369 = vunpack.c.l.b16 %v298
        %v370 = vunpack.c.l.b16 %v299
        %v371 = vunpack.c.l.b16 %v300
        %v372 = vunpack.c.l.b16 %v301
        %v373 = vunpack.c.l.b16 %v302
        %v374 = vunpack.c.l.b16 %v303
        %v375 = vunpack.c.l.b16 %v304
        %v376 = vunpack.c.l.b16 %v305
        %v377 = vunpack.c.l.b16 %v306
        %v378 = vunpack.c.l.b16 %v307
        %v379 = vunpack.c.l.b16 %v308
        %v380 = vunpack.c.l.b16 %v309
        %v381 = vunpack.c.l.b16 %v310
        %v382 = vunpack.c.l.b16 %v311
        %v383 = vunpack.c.l.b16 %v312
        %v384 = vunpack.c.l.b16 %v313
        %v385 = vunpack.c.l.b16 %v314
        %v386 = vunpack.c.l.b16 %v315
        %v387 = vunpack.c.l.b16 %v316
        %v388 = vunpack.c.l.b16 %v317
        %v389 = vunpack.c.l.b16 %v318
        %v390 = vunpack.c.l.b16 %v319
        %v391 = vunpack.c.l.b16 %v320
        %v392 = vunpack.c.l.b16 %v321
        %v393 = vunpack.c.l.b16 %v322
        %v394 = vunpack.c.l.b16 %v323
        %v395 = vunpack.c.l.b16 %v324
        %v396 = vunpack.c.l.b16 %v325
        %v397 = vunpack.c.l.b16 %v326
        %v398 = vunpack.c.l.b16 %v327
        %v399 = vunpack.c.l.b16 %v328
        %v400 = vunpack.c.l.b16 %v329
        %v401 = vpack.c.b16 %v370, %v369
        %v402 = vpack.c.b16 %v372, %v371
        %v403 = vpack.c.b16 %v374, %v373
        %v404 = vpack.c.b16 %v376, %v375
        %v405 = vpack.c.b16 %v378, %v377
        %v406 = vpack.c.b16 %v380, %v379
        %v407 = vpack.c.b16 %v382, %v381
        %v408 = vpack.c.b16 %v384, %v383
        %v409 = vpack.c.b16 %v386, %v385
        %v410 = vpack.c.b16 %v388, %v387
        %v411 = vpack.c.b16 %v390, %v389
        %v412 = vpack.c.b16 %v392, %v391
        %v413 = vpack.c.b16 %v394, %v393
        %v414 = vpack.c.b16 %v396, %v395
        %v415 = vpack.c.b16 %v398, %v397
        %v416 = vpack.c.b16 %v400, %v399
        %433 = vmatprep.subr.bf16.mxu0 0
        %434 = vmatpush1.bf16.msra.mxu0 %v401
        %435 = vmatprep.subr.bf16.mxu0 0
        %436 = vmatpush1.bf16.msra.mxu0 %v402
        %437 = vmatprep.subr.bf16.mxu0 0
        %438 = vmatpush1.bf16.msra.mxu0 %v403
        %439 = vmatprep.subr.bf16.mxu0 0
        %440 = vmatpush1.bf16.msra.mxu0 %v404
        %441 = vmatprep.subr.bf16.mxu0 0
        %442 = vmatpush1.bf16.msra.mxu0 %v405
        %443 = vmatprep.subr.bf16.mxu0 0
        %444 = vmatpush1.bf16.msra.mxu0 %v406
        %445 = vmatprep.subr.bf16.mxu0 0
        %446 = vmatpush1.bf16.msra.mxu0 %v407
        %447 = vmatprep.subr.bf16.mxu0 0
        %448 = vmatpush1.bf16.msra.mxu0 %v408
        %449 = vmatprep.subr.bf16.mxu0 0
        %450 = vmatpush1.bf16.msra.mxu0 %v409
        %451 = vmatprep.subr.bf16.mxu0 0
        %452 = vmatpush1.bf16.msra.mxu0 %v410
        %453 = vmatprep.subr.bf16.mxu0 0
        %454 = vmatpush1.bf16.msra.mxu0 %v411
        %455 = vmatprep.subr.bf16.mxu0 0
        %456 = vmatpush1.bf16.msra.mxu0 %v412
        %457 = vmatprep.subr.bf16.mxu0 0
        %458 = vmatpush1.bf16.msra.mxu0 %v413
        %459 = vmatprep.subr.bf16.mxu0 0
        %460 = vmatpush1.bf16.msra.mxu0 %v414
        %461 = vmatprep.subr.bf16.mxu0 0
        %462 = vmatpush1.bf16.msra.mxu0 %v415
        %463 = vmatprep.subr.bf16.mxu0 0
        %464 = vmatpush1.bf16.msra.mxu0 %v416
        %465 = vmatprep.mubr.bf16.mxu0 %v334
        %466 = vmatmul.mubr.bf16.gmra.mrb[0].mxu0 %v333
        %v467 = vpop.f32.mrb[0].mxu0
        %v468 = vadd.f32 0.0, %v467
        %v469 = vpop.f32.mrb[0].mxu0
        %v470 = vpop.f32.mrb[0].mxu0
        %v471 = vpop.f32.mrb[0].mxu0
        %472 = vdwg.mxu0
        %v473 = vld [vmem:[%s292] sm:$0x1]
        %v475 = vlaneseq
        %v476 = vshrl.u32 %v475, 7
        %v477 = vsub.s32 0, %v476
        %v478 = vrot.slane %v473, %v477
        %v480 = vmul.f32 %v468, %v478
        %v481 = vld [vmem:[%s295] sm:$0x1]
        %v483 = vlaneseq
        %v484 = vshrl.u32 %v483, 7
        %v485 = vsub.s32 0, %v484
        %v486 = vrot.slane %v481, %v485
        %v488 = vadd.f32 %v480, %v486
        %489 = vst [vmem:[%s287] sm:$0xff] %v488
        %s490 = sand.u32 %s159, 1
        %s491 = scalar_lea.sflag [#allocation4], %s490
        %s492 = sand.u32 %s159, 1
        %s493 = smul.addr %s492, 8
        %s494 = scalar_lea.vmem [#allocation7], %s493
        // Predicated region
        $region45: #{tpu_custom_call.1} parent=35 // pred_check
          %p495 = pneg %p169
        $region46: #{tpu_custom_call.1} parent=35 // pred_check_branch
          %497 = sbr.rel (%p495) target = $region48
        $region47: #{tpu_custom_call.1} parent=35 // pred_region
          %s499 = ssub.s32 128, 128
          %500 = vsyncadd %s491, %s499
          %s501 = smul.addr %s27, 2
          %s502 = sadd.s32 %s28, %s501
          %s503 = smul.addr %s502, 128
          %s504 = scalar_lea.hbm %s4, %s503
          %s506 = sshll.u32 %s494, 4
          %s507 = int_to_ptr.vmem [resolvable:$true] %s506
          %509 = dma.vmem_to_hbm [thread:$0]  %s507, 128, %s504, %s491
        $region48: #{tpu_custom_call.1} parent=35 // pred_fallthru
          _
      $region36: #{tpu_custom_call.1} parent=5 // pred_fallthru
        _
      %p510 = scmp.le.s32.totalorder 2, %s17
      // Predicated region
      $region49: #{tpu_custom_call.1} parent=5 // pred_check
        %p511 = pneg %p510
      $region50: #{tpu_custom_call.1} parent=5 // pred_check_branch
        %513 = sbr.rel (%p511) target = $region52
      $region51: #{tpu_custom_call.1} parent=5 // pred_region
        %s514 = ssub.s32 %s17, 2
        // Predicated region
        $region53: #{tpu_custom_call.1} parent=51 // pred_check
          %p515 = pneg %p175
        $region54: #{tpu_custom_call.1} parent=51 // pred_check_branch
          %517 = sbr.rel (%p515) target = $region56
        $region55: #{tpu_custom_call.1} parent=51 // pred_region
          %s518 = sand.u32 %s160, 1
          %s519 = scalar_lea.sflag [#allocation4], %s518
          %s520 = sand.u32 %s160, 1
          %s521 = smul.addr %s520, 8
          %s522 = scalar_lea.vmem [#allocation7], %s521
          %523 = dma.done %s519, 128
        $region56: #{tpu_custom_call.1} parent=51 // pred_fallthru
          _
      $region52: #{tpu_custom_call.1} parent=5 // pred_fallthru
        _
    $region6: #{tpu_custom_call.1} parent=1 // loop_footer
      %s21 = sadd.s32 1, %s17
    $region7: #{tpu_custom_call.1} parent=1 // loop_footer_branch
      %16 = sbr.rel target = $region3
    $region8: #{tpu_custom_call.1} parent=1 // loop_exit
      _
    %524 = vsyncpa [#allocation3], 1
    %s525 = scalar_lea.sflag [#allocation3], 1
    %526 = vsyncpa %s525, 1
    %527 = vsyncpa [#allocation6], 1
    %s528 = scalar_lea.sflag [#allocation6], 1
    %529 = vsyncpa %s528, 1
    %530 = vsyncpa [#allocation4], 1
    %s531 = scalar_lea.sflag [#allocation4], 1
    %532 = vsyncpa %s531, 1

</llo_original>
